<compile_context>
chip_gen: v6e
topology: v6e:2x2x1
jax: 0.10.0
libtpu: 0.0.40
codegen_flags: <defaults>
</compile_context>

<pallas_src>
import jax
import jax.numpy as jnp
from jax import lax
from jax.experimental import pallas as pl
from jax.experimental.pallas import tpu as pltpu

RGB2BW_WEIGHTS = (0.299, 0.587, 0.114)

_FALLBACK_VMEM_CAPACITY = 64 * 1024 * 1024      # conservative (v7x physical VMEM)


def _vmem_budgets():
    """Generation-aware (vmem_limit_bytes, tile_budget_bytes)."""
    try:
        cap = int(pltpu.get_tpu_info().vmem_capacity_bytes)
    except Exception:
        cap = _FALLBACK_VMEM_CAPACITY
    # 128 MiB parts (v5e/v6e) -> ~96 MiB limit / ~64 MiB tile budget;
    # 64 MiB parts (v7x)      -> ~48 MiB limit / ~32 MiB tile budget.
    vmem_limit = min((cap * 3) // 4, 100 * 1024 * 1024)
    tile_budget = (vmem_limit * 2) // 3
    return int(vmem_limit), int(tile_budget)


def _pick_h_tile(H, W, orig_itemsize, est_itemsize, budget_bytes):
    """Largest row-band tile (multiple of 8, or full H) fitting the VMEM budget."""
    # Double-buffered inputs dominate; fixed cost: (8,W) f32 accumulator and the
    # double-buffered (8,128) f32 output block.
    fixed = 8 * W * 4 + 2 * 8 * 128 * 4
    per_row = 2 * W * (3 * orig_itemsize + est_itemsize)
    max_rows = max(8, (budget_bytes - fixed) // per_row)
    if H <= max_rows:
        return int(H)                       # full extent is always a legal block dim
    return int((max_rows // 8) * 8)         # sublane-aligned


def _make_kernel(H, W, h_tile, border, acc_rows):
    w_r, w_g, w_b = RGB2BW_WEIGHTS

    def kernel(orig_ref, est_ref, out_ref, acc_ref):
        h = pl.program_id(1)

        @pl.when(h == 0)                     # per-batch init (megacore-safe)
        def _init():
            acc_ref[...] = jnp.zeros_like(acc_ref)

        # RGB2BW on the VPU, upcasting per tile (inputs may be u8/bf16/f32).
        r = orig_ref[0].astype(jnp.float32)          # (h_tile, W)
        g = orig_ref[1].astype(jnp.float32)
        bch = orig_ref[2].astype(jnp.float32)
        gt = w_r * r + w_g * g + w_b * bch

        est = est_ref[...].astype(jnp.float32)       # (h_tile, W)
        diff = jnp.abs(gt - est)

        # Hoisted border mask: narrow iotas + compares, then one broadcast AND
        # and one select per element.  The row predicate also discards padded
        # rows (>= H) of a partial last tile, so garbage never enters the sum.
        row0 = h * h_tile
        h_idx = row0 + lax.broadcasted_iota(jnp.int32, (h_tile, 1), 0)
        w_idx = lax.broadcasted_iota(jnp.int32, (1, W), 1)
        row_valid = (h_idx >= border) & (h_idx < H - border)
        col_valid = (w_idx >= border) & (w_idx < W - border)
        masked = jnp.where(row_valid & col_valid, diff, 0.0)   # select, never NaN*0

        # Fold into the small accumulator with pure-VALU vreg adds.
        if acc_rows == h_tile:
            acc_ref[...] += masked
        else:
            acc_ref[...] += jnp.sum(
                masked.reshape(h_tile // acc_rows, acc_rows, W), axis=0)

        @pl.when(h == pl.num_programs(1) - 1)        # per-batch finalize
        def _finalize():
            out_ref[...] = jnp.broadcast_to(jnp.sum(acc_ref[...]), out_ref.shape)

    return kernel


def loss_simple_rgb2bw(center_frame_original, model_output, non_valid_border_size):
    """center_frame_original: (B, 3, H, W) NCHW (u8/bf16/f32 -- pass the narrowest
       dtype you have; the kernel upcasts per tile).
       model_output:          (B, 1, H, W) NCHW.
       Returns scalar total_loss (float32)."""
    B, C, H, W = center_frame_original.shape
    assert C == 3 and model_output.shape == (B, 1, H, W)
    border = int(non_valid_border_size)
    assert border >= 0

    orig_itemsize = jnp.dtype(center_frame_original.dtype).itemsize
    est_itemsize = jnp.dtype(model_output.dtype).itemsize

    vmem_limit, tile_budget = _vmem_budgets()
    h_tile = _pick_h_tile(H, W, orig_itemsize, est_itemsize, tile_budget)
    grid_h = pl.cdiv(H, h_tile)
    acc_rows = 8 if h_tile % 8 == 0 else h_tile      # h_tile % 8 != 0 only when h_tile == H

    # Closed-form denominator (== sum(mask)); n_valid == 0 -> NaN matches torch 0/0.
    n_valid = B * max(H - 2 * border, 0) * max(W - 2 * border, 0)
    inv_den = (1.0 / n_valid) if n_valid > 0 else float("nan")

    kernel = _make_kernel(H, W, h_tile, border, acc_rows)

    cost = pl.CostEstimate(
        flops=10 * B * H * W,
        transcendentals=0,
        bytes_accessed=int(center_frame_original.size) * orig_itemsize
        + int(model_output.size) * est_itemsize + B * 8 * 128 * 4,
    )

    partials = pl.pallas_call(
        kernel,
        out_shape=jax.ShapeDtypeStruct((B, 8, 128), jnp.float32),
        grid_spec=pltpu.PrefetchScalarGridSpec(
            num_scalar_prefetch=0,
            grid=(B, grid_h),
            in_specs=[
                # native NCHW frame: batch squeezed, full channel dim, row band
                pl.BlockSpec((None, 3, h_tile, W), lambda b, h: (b, 0, h, 0)),
                # BW estimate: batch + channel squeezed, row band
                pl.BlockSpec((None, None, h_tile, W), lambda b, h: (b, 0, h, 0)),
            ],
            # one lane-aligned partial-sum block per batch element
            out_specs=pl.BlockSpec((None, 8, 128), lambda b, h: (b, 0, 0)),
            scratch_shapes=[pltpu.VMEM((acc_rows, W), jnp.float32)],
        ),
        compiler_params=pltpu.CompilerParams(
            # batch axis owns its output + re-initialized accumulator -> safe to
            # shard across TensorCores (v7x megacore); H axis is the reduction.
            dimension_semantics=("parallel", "arbitrary"),
            vmem_limit_bytes=vmem_limit,
        ),
        cost_estimate=cost,
    )(center_frame_original, model_output)

    # Tiny cross-batch reduce + fold the divide into a multiply (plain XLA).
    return jnp.sum(partials[:, 0, 0]) * jnp.float32(inv_den)


def _reference_loss(orig, est, border):
    # plain-JAX reference of the PyTorch forward
    w = jnp.array(RGB2BW_WEIGHTS, jnp.float32).reshape(1, 3, 1, 1)
    gt = jnp.sum(orig.astype(jnp.float32) * w, axis=1, keepdims=True)  # (B,1,H,W)
    B, _, H, W = orig.shape
    hh = jnp.arange(H).reshape(1, 1, H, 1)
    ww = jnp.arange(W).reshape(1, 1, 1, W)
    mask = ((hh >= border) & (hh < H - border)
            & (ww >= border) & (ww < W - border)).astype(jnp.float32)
    mask = jnp.broadcast_to(mask, (B, 1, H, W))
    return jnp.sum(jnp.abs(gt - est.astype(jnp.float32)) * mask) / jnp.sum(mask)


if __name__ == "__main__":
    key = jax.random.PRNGKey(0)
    k1, k2 = jax.random.split(key)

    B, H, W = 2, 16, 16
    non_valid_border_size = 2     # Train_dict.non_valid_border_size

    # id.center_frame_original : RGB frames, NCHW
    center_frame_original = jax.random.uniform(k1, (B, 3, H, W), jnp.float32)
    # od.model_output : BW clean-image estimate, NCHW
    model_output = jax.random.uniform(k2, (B, 1, H, W), jnp.float32)

    total_loss = loss_simple_rgb2bw(center_frame_original, model_output,
                                    non_valid_border_size)
    total_loss = jax.block_until_ready(total_loss)

    ref = _reference_loss(center_frame_original, model_output, non_valid_border_size)
    assert jnp.allclose(total_loss, ref, rtol=1e-5, atol=1e-6), (total_loss, ref)

    print("KERNEL_OK")
</pallas_src>

<mosaic_0001>
module attributes {stable_mosaic.version = 11 : i64} {
  func.func @kernel(%arg0: i32, %arg1: i32, %arg2: memref<1x3x16x16xf32, #tpu.memory_space<vmem>>, %arg3: memref<1x1x16x16xf32, #tpu.memory_space<vmem>>, %arg4: memref<1x8x128xf32, #tpu.memory_space<vmem>>, %arg5: memref<8x16xf32, #tpu.memory_space<vmem>>) attributes {dimension_semantics = [#tpu.dimension_semantics<parallel>, #tpu.dimension_semantics<arbitrary>], iteration_bounds = array<i64: 2, 1>, scalar_prefetch = 0 : i64, scratch_operands = 1 : i64, tpu.core_type = #tpu.core_type<tc>, window_params = [{transform_indices = @transform_0, window_bounds = array<i64: 1, 3, 16, 16>}, {transform_indices = @transform_1, window_bounds = array<i64: 1, 1, 16, 16>}, {transform_indices = @transform_2, window_bounds = array<i64: 1, 8, 128>}]} {
    %c0_i32 = arith.constant 0 : i32
    %0 = arith.cmpi eq, %arg1, %c0_i32 : i32
    %1 = arith.extui %0 : i1 to i32
    %c0_i32_0 = arith.constant 0 : i32
    %2 = arith.cmpi ne, %1, %c0_i32_0 : i32
    scf.if %2 {
      %cst_26 = arith.constant 0.000000e+00 : f32
      %49 = vector.broadcast %cst_26 : f32 to vector<8x16xf32>
      %c0_27 = arith.constant 0 : index
      %c0_28 = arith.constant 0 : index
      %50 = vector.load %arg5[%c0_27, %c0_28] : memref<8x16xf32, #tpu.memory_space<vmem>>, vector<8x16xf32>
      tpu.vector_store %arg5[%c0_27, %c0_28], %49 {strides = array<i32>} : memref<8x16xf32, #tpu.memory_space<vmem>>, vector<8x16xf32>,
    } else {
    }
    %c0 = arith.constant 0 : index
    %c0_1 = arith.constant 0 : index
    %c0_2 = arith.constant 0 : index
    %c0_3 = arith.constant 0 : index
    %3 = vector.load %arg2[%c0, %c0_1, %c0_2, %c0_3] : memref<1x3x16x16xf32, #tpu.memory_space<vmem>>, vector<1x1x16x16xf32>
    %4 = vector.shape_cast %3 : vector<1x1x16x16xf32> to vector<16x16xf32>
    %c0_4 = arith.constant 0 : index
    %c1 = arith.constant 1 : index
    %c0_5 = arith.constant 0 : index
    %c0_6 = arith.constant 0 : index
    %5 = vector.load %arg2[%c0_4, %c1, %c0_5, %c0_6] : memref<1x3x16x16xf32, #tpu.memory_space<vmem>>, vector<1x1x16x16xf32>
    %6 = vector.shape_cast %5 : vector<1x1x16x16xf32> to vector<16x16xf32>
    %c0_7 = arith.constant 0 : index
    %c2 = arith.constant 2 : index
    %c0_8 = arith.constant 0 : index
    %c0_9 = arith.constant 0 : index
    %7 = vector.load %arg2[%c0_7, %c2, %c0_8, %c0_9] : memref<1x3x16x16xf32, #tpu.memory_space<vmem>>, vector<1x1x16x16xf32>
    %8 = vector.shape_cast %7 : vector<1x1x16x16xf32> to vector<16x16xf32>
    %cst = arith.constant 2.990000e-01 : f32
    %9 = vector.broadcast %cst : f32 to vector<16x16xf32>
    %10 = arith.mulf %9, %4 : vector<16x16xf32>
    %cst_10 = arith.constant 5.870000e-01 : f32
    %11 = vector.broadcast %cst_10 : f32 to vector<16x16xf32>
    %12 = arith.mulf %11, %6 : vector<16x16xf32>
    %13 = arith.addf %10, %12 : vector<16x16xf32>
    %cst_11 = arith.constant 1.140000e-01 : f32
    %14 = vector.broadcast %cst_11 : f32 to vector<16x16xf32>
    %15 = arith.mulf %14, %8 : vector<16x16xf32>
    %16 = arith.addf %13, %15 : vector<16x16xf32>
    %c0_12 = arith.constant 0 : index
    %c0_13 = arith.constant 0 : index
    %c0_14 = arith.constant 0 : index
    %c0_15 = arith.constant 0 : index
    %17 = vector.load %arg3[%c0_12, %c0_13, %c0_14, %c0_15] : memref<1x1x16x16xf32, #tpu.memory_space<vmem>>, vector<1x1x16x16xf32>
    %18 = vector.shape_cast %17 : vector<1x1x16x16xf32> to vector<16x16xf32>
    %19 = arith.subf %16, %18 : vector<16x16xf32>
    %20 = math.absf %19 : vector<16x16xf32>
    %c16_i32 = arith.constant 16 : i32
    %21 = arith.muli %arg1, %c16_i32 : i32
    %22 = tpu.iota {dimensions = array<i32: 0>} : vector<16x1xi32>
    %23 = vector.broadcast %21 : i32 to vector<16x1xi32>
    %24 = arith.addi %23, %22 : vector<16x1xi32>
    %25 = tpu.iota {dimensions = array<i32: 1>} : vector<1x16xi32>
    %c2_i32 = arith.constant 2 : i32
    %26 = vector.broadcast %c2_i32 : i32 to vector<16x1xi32>
    %27 = arith.cmpi sge, %24, %26 : vector<16x1xi32>
    %c14_i32 = arith.constant 14 : i32
    %28 = vector.broadcast %c14_i32 : i32 to vector<16x1xi32>
    %29 = arith.cmpi slt, %24, %28 : vector<16x1xi32>
    %30 = arith.andi %27, %29 : vector<16x1xi1>
    %c2_i32_16 = arith.constant 2 : i32
    %31 = vector.broadcast %c2_i32_16 : i32 to vector<1x16xi32>
    %32 = arith.cmpi sge, %25, %31 : vector<1x16xi32>
    %c14_i32_17 = arith.constant 14 : i32
    %33 = vector.broadcast %c14_i32_17 : i32 to vector<1x16xi32>
    %34 = arith.cmpi slt, %25, %33 : vector<1x16xi32>
    %35 = arith.andi %32, %34 : vector<1x16xi1>
    %36 = vector.broadcast %30 : vector<16x1xi1> to vector<16x16xi1>
    %37 = vector.broadcast %35 : vector<1x16xi1> to vector<16x16xi1>
    %38 = arith.andi %36, %37 : vector<16x16xi1>
    %cst_18 = arith.constant 0.000000e+00 : f32
    %39 = vector.broadcast %cst_18 : f32 to vector<16x16xf32>
    %40 = arith.select %38, %20, %39 : vector<16x16xi1>, vector<16x16xf32>
    %c0_19 = arith.constant 0 : index
    %c0_20 = arith.constant 0 : index
    %41 = vector.load %arg5[%c0_19, %c0_20] : memref<8x16xf32, #tpu.memory_space<vmem>>, vector<8x16xf32>
    %42 = vector.shape_cast %40 : vector<16x16xf32> to vector<2x8x16xf32>
    %cst_21 = arith.constant dense<0.000000e+00> : vector<8x16xf32>
    %43 = vector.multi_reduction <add>, %42, %cst_21 [0] : vector<2x8x16xf32> to vector<8x16xf32>
    %44 = arith.addf %41, %43 : vector<8x16xf32>
    %c0_22 = arith.constant 0 : index
    %c0_23 = arith.constant 0 : index
    %45 = vector.load %arg5[%c0_22, %c0_23] : memref<8x16xf32, #tpu.memory_space<vmem>>, vector<8x16xf32>
    tpu.vector_store %arg5[%c0_22, %c0_23], %44 {strides = array<i32>} : memref<8x16xf32, #tpu.memory_space<vmem>>, vector<8x16xf32>,
    %c0_i32_24 = arith.constant 0 : i32
    %46 = arith.cmpi eq, %arg1, %c0_i32_24 : i32
    %47 = arith.extui %46 : i1 to i32
    %c0_i32_25 = arith.constant 0 : i32
    %48 = arith.cmpi ne, %47, %c0_i32_25 : i32
    scf.if %48 {
      %c0_26 = arith.constant 0 : index
      %c0_27 = arith.constant 0 : index
      %49 = vector.load %arg5[%c0_26, %c0_27] : memref<8x16xf32, #tpu.memory_space<vmem>>, vector<8x16xf32>
      %50 = vector.shape_cast %49 : vector<8x16xf32> to vector<1x8x16xf32>
      %cst_28 = arith.constant dense<0.000000e+00> : vector<1xf32>
      %51 = vector.multi_reduction <add>, %50, %cst_28 [1, 2] : vector<1x8x16xf32> to vector<1xf32>
      %52 = vector.shape_cast %51 : vector<1xf32> to vector<1x1x1xf32>
      %53 = vector.extract %52[0, 0, 0] : f32 from vector<1x1x1xf32>
      %54 = vector.broadcast %53 : f32 to vector<8x128xf32>
      %c0_29 = arith.constant 0 : index
      %c0_30 = arith.constant 0 : index
      %c0_31 = arith.constant 0 : index
      %55 = vector.load %arg4[%c0_29, %c0_30, %c0_31] : memref<1x8x128xf32, #tpu.memory_space<vmem>>, vector<1x8x128xf32>
      %56 = vector.shape_cast %55 : vector<1x8x128xf32> to vector<8x128xf32>
      %57 = vector.shape_cast %54 : vector<8x128xf32> to vector<1x8x128xf32>
      tpu.vector_store %arg4[%c0_29, %c0_30, %c0_31], %57 {strides = array<i32>} : memref<1x8x128xf32, #tpu.memory_space<vmem>>, vector<1x8x128xf32>,
    } else {
    }
    return
  }
  func.func @transform_0(%arg0: i32, %arg1: i32) -> (i32, i32, i32, i32) {
    %c0_i32 = arith.constant 0 : i32
    %c0_i32_0 = arith.constant 0 : i32
    %c0_i32_1 = arith.constant 0 : i32
    return %arg0, %c0_i32, %arg1, %c0_i32_0 : i32, i32, i32, i32
  }
  func.func @transform_1(%arg0: i32, %arg1: i32) -> (i32, i32, i32, i32) {
    %c0_i32 = arith.constant 0 : i32
    %c0_i32_0 = arith.constant 0 : i32
    %c0_i32_1 = arith.constant 0 : i32
    return %arg0, %c0_i32, %arg1, %c0_i32_0 : i32, i32, i32, i32
  }
  func.func @transform_2(%arg0: i32, %arg1: i32) -> (i32, i32, i32) {
    %c0_i32 = arith.constant 0 : i32
    %c0_i32_0 = arith.constant 0 : i32
    %c0_i32_1 = arith.constant 0 : i32
    return %arg0, %c0_i32, %c0_i32_0 : i32, i32, i32
  }
}

</mosaic_0001>

<llo_original>
// kernel: tpu_custom_call.1
$region0: #{tpu_custom_call.1}
  #allocation0 [shape = 'u32[]', space=smem, size = 0x4, offset = 0x4, fixed_abs, tag = 'smem constant byte address 0x4 - core index']
  #allocation1 [shape = 'u32[144,128]{1,0:T(1,128)}', space=vmem, size = 0x12000, scoped, tag = 'internal scratch']
  #allocation2 [shape = 'f32[8,16]{1,0:T(8,128)}', space=vmem, size = 0x1000, scoped, tag = 'scratch operand']
  %s0 = inlined_call_operand.hbm [shape: f32[2,3,16,16], index: 0, kind: input, shape index: {}]
  %s1 = inlined_call_operand.hbm [shape: f32[2,1,16,16], index: 1, kind: input, shape index: {}]
  %s2 = inlined_call_operand.hbm [shape: f32[2,8,128], index: 2, kind: output, shape index: {}]
  %s3 = sld [smem:[#allocation0]]
  $region57: #{tpu_custom_call.1} parent=0
    _
  %s5 = ssub.s32 1, %s3
  %s6 = scalar_select 0, %s5, %s3
  $region1: #{tpu_custom_call.1} parent=0
    #allocation3 [shape = 'u8[49152]{0}', space=vmem, size = 0xc000, scoped, tag = 'input window, operand 0']
    #allocation4 [shape = 's32[2]{0}', space=sflag, size = 0x8, scoped, tag = 'scoped memory for tpu_custom_call.1']
    #allocation5 [shape = 's32[2]{0}', space=sflag, size = 0x8, scoped, tag = 'scoped memory for tpu_custom_call.1']
    #allocation6 [shape = 'u8[16384]{0}', space=vmem, size = 0x4000, scoped, tag = 'input window, operand 1']
    #allocation7 [shape = 's32[2]{0}', space=sflag, size = 0x8, scoped, tag = 'scoped memory for tpu_custom_call.1']
    #allocation8 [shape = 'u8[8192]{0}', space=vmem, size = 0x2000, scoped, tag = 'output window, operand 0']
    %7 = vsyncpa [#allocation4], 0
    %s8 = scalar_lea.sflag [#allocation4], 1
    %9 = vsyncpa %s8, 0
    %10 = vsyncpa [#allocation7], 0
    %s11 = scalar_lea.sflag [#allocation7], 1
    %12 = vsyncpa %s11, 0
    %13 = vsyncpa [#allocation5], 0
    %s14 = scalar_lea.sflag [#allocation5], 1
    %15 = vsyncpa %s14, 0
    loop: start=0, step=1, limit=4
    $region2: #{tpu_custom_call.1} parent=1 // loop_pre_header
      _
    $region3: #{tpu_custom_call.1} parent=1 // loop_header
      %s17 = sphi 0, %s21
      %p18 = scmp.ge.s32.totalorder %s17, 4
      %s24 = sphi 0, %s36
      %s25 = sphi 0, %s32
      %s26 = sphi 0, %s24
      %s27 = sphi 0, %s25
      %s28 = sphi 0, %s26
      %s29 = sphi 0, %s27
      %s41 = sphi 0, %s43
      %s44 = sphi 0, %s41
      %s45 = sphi 0, %s44
      %s61 = sphi 0, %s45
      %s69 = sphi 0, %s71
      %s72 = sphi 0, %s69
      %s73 = sphi 0, %s72
      %s89 = sphi 0, %s73
      %s95 = sphi 0, %s97
      %s98 = sphi 0, %s95
      %s99 = sphi 0, %s98
      %s115 = sphi 0, %s99
    $region4: #{tpu_custom_call.1} parent=1 // loop_header_branch
      %20 = sbr.rel (%p18) target = $region8
    $region5: #{tpu_custom_call.1} parent=1 // loop_body
      %s22 = ssub.s32 %s17, 1
      %s23 = ssub.s32 %s17, 2
      %s30 = sadd.s32 1, %s25
      %p31 = scmp.ge.s32.totalorder %s30, 1
      %s32 = scalar_select %p31, 0, %s30
      %s33 = sadd.s32 1, %s24
      %s34 = scalar_select %p31, %s33, %s24
      %p35 = scmp.ge.s32.totalorder %s34, 2
      %s36 = scalar_select %p35, 0, %s34
      %s37 = ssub.s32 %s24, %s36
      %s38 = ssub.s32 %s25, %s32
      %s39 = sor.u32 %s37, %s38
      %p40 = scmp.eq.s32.totalorder %s39, 0
      %s42 = sadd.s32 %s41, 1
      %s43 = scalar_select %p40, %s41, %s42
      %p46 = pneg %p40
      %p47 = scmp.eq.s32.totalorder %s17, 1
      %p48 = por %p46, %p47
      %p49 = scmp.ne.s32.totalorder %s41, %s44
      %p50 = scmp.eq.s32.totalorder %s17, 0
      %p51 = por %p49, %p50
      %p52 = scmp.ne.s32.totalorder %s41, %s44
      %p53 = scmp.eq.s32.totalorder %s22, 1
      %p54 = por %p52, %p53
      %p55 = scmp.ne.s32.totalorder %s44, %s45
      %p56 = scmp.eq.s32.totalorder %s22, 0
      %p57 = por %p55, %p56
      %p58 = scmp.ne.s32.totalorder %s44, %s45
      %p59 = scmp.eq.s32.totalorder %s23, 1
      %p60 = por %p58, %p59
      %p62 = scmp.ne.s32.totalorder %s45, %s61
      %p63 = scmp.eq.s32.totalorder %s23, 0
      %p64 = por %p62, %p63
      %s65 = ssub.s32 %s24, %s36
      %s66 = ssub.s32 %s25, %s32
      %s67 = sor.u32 %s65, %s66
      %p68 = scmp.eq.s32.totalorder %s67, 0
      %s70 = sadd.s32 %s69, 1
      %s71 = scalar_select %p68, %s69, %s70
      %p74 = pneg %p68
      %p75 = scmp.eq.s32.totalorder %s17, 1
      %p76 = por %p74, %p75
      %p77 = scmp.ne.s32.totalorder %s69, %s72
      %p78 = scmp.eq.s32.totalorder %s17, 0
      %p79 = por %p77, %p78
      %p80 = scmp.ne.s32.totalorder %s69, %s72
      %p81 = scmp.eq.s32.totalorder %s22, 1
      %p82 = por %p80, %p81
      %p83 = scmp.ne.s32.totalorder %s72, %s73
      %p84 = scmp.eq.s32.totalorder %s22, 0
      %p85 = por %p83, %p84
      %p86 = scmp.ne.s32.totalorder %s72, %s73
      %p87 = scmp.eq.s32.totalorder %s23, 1
      %p88 = por %p86, %p87
      %p90 = scmp.ne.s32.totalorder %s73, %s89
      %p91 = scmp.eq.s32.totalorder %s23, 0
      %p92 = por %p90, %p91
      %s93 = ssub.s32 %s24, %s36
      %p94 = scmp.eq.s32.totalorder %s93, 0
      %s96 = sadd.s32 %s95, 1
      %s97 = scalar_select %p94, %s95, %s96
      %p100 = pneg %p94
      %p101 = scmp.eq.s32.totalorder %s17, 1
      %p102 = por %p100, %p101
      %p103 = scmp.ne.s32.totalorder %s95, %s98
      %p104 = scmp.eq.s32.totalorder %s17, 0
      %p105 = por %p103, %p104
      %p106 = scmp.ne.s32.totalorder %s95, %s98
      %p107 = scmp.eq.s32.totalorder %s22, 1
      %p108 = por %p106, %p107
      %p109 = scmp.ne.s32.totalorder %s98, %s99
      %p110 = scmp.eq.s32.totalorder %s22, 0
      %p111 = por %p109, %p110
      %p112 = scmp.ne.s32.totalorder %s98, %s99
      %p113 = scmp.eq.s32.totalorder %s23, 1
      %p114 = por %p112, %p113
      %p116 = scmp.ne.s32.totalorder %s99, %s115
      %p117 = scmp.eq.s32.totalorder %s23, 0
      %p118 = por %p116, %p117
      %p119 = scmp.le.s32.totalorder 1, %s17
      %p120 = scmp.lt.s32.totalorder %s17, 3
      %p121 = pnand %p119, %p120
      %p122 = pneg %p121
      // Predicated region
      $region9: #{tpu_custom_call.1} parent=5 // pred_check
        _
      $region10: #{tpu_custom_call.1} parent=5 // pred_check_branch
        %124 = sbr.rel (%p121) target = $region12
      $region11: #{tpu_custom_call.1} parent=5 // pred_region
        %s125 = ssub.s32 %s17, 1
      $region12: #{tpu_custom_call.1} parent=5 // pred_fallthru
        _
      %p126 = scmp.lt.s32.totalorder %s17, 2
      // Predicated region
      $region13: #{tpu_custom_call.1} parent=5 // pred_check
        %p127 = pneg %p126
      $region14: #{tpu_custom_call.1} parent=5 // pred_check_branch
        %129 = sbr.rel (%p127) target = $region16
      $region15: #{tpu_custom_call.1} parent=5 // pred_region
        // Predicated region
        $region17: #{tpu_custom_call.1} parent=15 // pred_check
          %p130 = pneg %p51
        $region18: #{tpu_custom_call.1} parent=15 // pred_check_branch
          %132 = sbr.rel (%p130) target = $region20
        $region19: #{tpu_custom_call.1} parent=15 // pred_region
          %s133 = sand.u32 %s41, 1
          %s134 = scalar_lea.sflag [#allocation4], %s133
          %s135 = sand.u32 %s41, 1
          %s136 = smul.addr %s135, 48
          %s137 = scalar_lea.vmem [#allocation3], %s136
          %s138 = smul.u32 2, %s25
          %s140 = ssub.s32 768, 768
          %141 = vsyncadd %s134, %s140
          %s142 = smul.addr %s24, 6
          %s143 = sadd.s32 %s138, %s142
          %s144 = smul.addr %s143, 128
          %s145 = scalar_lea.hbm %s0, %s144
          %s146 = sshll.u32 %s137, 4
          %s147 = int_to_ptr.vmem [resolvable:$true] %s146
          %152 = dma.hbm_to_vmem [thread:$0]  %s145, 768, %s147, %s134, 128, 128, 8
        $region20: #{tpu_custom_call.1} parent=15 // pred_fallthru
          _
        // Predicated region
        $region21: #{tpu_custom_call.1} parent=15 // pred_check
          %p153 = pneg %p79
        $region22: #{tpu_custom_call.1} parent=15 // pred_check_branch
          %155 = sbr.rel (%p153) target = $region24
        $region23: #{tpu_custom_call.1} parent=15 // pred_region
          %s156 = sand.u32 %s69, 1
          %s157 = scalar_lea.sflag [#allocation7], %s156
          %s158 = sand.u32 %s69, 1
          %s159 = smul.addr %s158, 16
          %s160 = scalar_lea.vmem [#allocation6], %s159
          %s161 = smul.u32 2, %s25
          %s163 = ssub.s32 256, 256
          %164 = vsyncadd %s157, %s163
          %s165 = smul.addr %s24, 2
          %s166 = sadd.s32 %s161, %s165
          %s167 = smul.addr %s166, 128
          %s168 = scalar_lea.hbm %s1, %s167
          %s169 = sshll.u32 %s160, 4
          %s170 = int_to_ptr.vmem [resolvable:$true] %s169
          %175 = dma.hbm_to_vmem [thread:$0]  %s168, 256, %s170, %s157, 128, 128, 8
        $region24: #{tpu_custom_call.1} parent=15 // pred_fallthru
          _
      $region16: #{tpu_custom_call.1} parent=5 // pred_fallthru
        _
      %p176 = scmp.le.s32.totalorder 1, %s17
      %p177 = scmp.lt.s32.totalorder %s17, 3
      %p178 = pnand %p176, %p177
      %p179 = pneg %p178
      // Predicated region
      $region25: #{tpu_custom_call.1} parent=5 // pred_check
        _
      $region26: #{tpu_custom_call.1} parent=5 // pred_check_branch
        %181 = sbr.rel (%p178) target = $region28
      $region27: #{tpu_custom_call.1} parent=5 // pred_region
        %s182 = ssub.s32 %s17, 1
        %s183 = sand.u32 %s44, 1
        %s184 = scalar_lea.sflag [#allocation4], %s183
        %s185 = sand.u32 %s44, 1
        %s186 = smul.addr %s185, 48
        %s187 = scalar_lea.vmem [#allocation3], %s186
        // Predicated region
        $region29: #{tpu_custom_call.1} parent=27 // pred_check
          %p188 = pneg %p57
        $region30: #{tpu_custom_call.1} parent=27 // pred_check_branch
          %190 = sbr.rel (%p188) target = $region32
        $region31: #{tpu_custom_call.1} parent=27 // pred_region
          %191 = dma.done %s184, 768
        $region32: #{tpu_custom_call.1} parent=27 // pred_fallthru
          _
        %s192 = sand.u32 %s72, 1
        %s193 = scalar_lea.sflag [#allocation7], %s192
        %s194 = sand.u32 %s72, 1
        %s195 = smul.addr %s194, 16
        %s196 = scalar_lea.vmem [#allocation6], %s195
        // Predicated region
        $region33: #{tpu_custom_call.1} parent=27 // pred_check
          %p197 = pneg %p85
        $region34: #{tpu_custom_call.1} parent=27 // pred_check_branch
          %199 = sbr.rel (%p197) target = $region36
        $region35: #{tpu_custom_call.1} parent=27 // pred_region
          %200 = dma.done %s193, 256
        $region36: #{tpu_custom_call.1} parent=27 // pred_fallthru
          _
        %s201 = sand.u32 %s44, 1
        %s202 = scalar_lea.sflag [#allocation4], %s201
        %s203 = sand.u32 %s44, 1
        %s204 = smul.addr %s203, 48
        %s205 = scalar_lea.vmem [#allocation3], %s204
        %p206 = pneg %p57
        %p207 = pneg %p54
        %s208 = sand.u32 %s72, 1
        %s209 = scalar_lea.sflag [#allocation7], %s208
        %s210 = sand.u32 %s72, 1
        %s211 = smul.addr %s210, 16
        %s212 = scalar_lea.vmem [#allocation6], %s211
        %p213 = pneg %p85
        %p214 = pneg %p82
        %p215 = pneg %p111
        %p216 = pneg %p108
        %s217 = sand.u32 %s98, 1
        %s218 = scalar_lea.sflag [#allocation5], %s217
        %s219 = sand.u32 %s98, 1
        %s220 = smul.addr %s219, 8
        %s221 = scalar_lea.vmem [#allocation8], %s220
        %s222 = smul.u32 2, %s27
        %s223 = smul.u32 2, %s27
        %p224 = scmp.eq.s32.totalorder %s27, 0
        // Predicated region
        $region37: #{tpu_custom_call.1} parent=27 // pred_check
          %p225 = pneg %p224
        $region38: #{tpu_custom_call.1} parent=27 // pred_check_branch
          %227 = sbr.rel (%p225) target = $region40
        $region39: #{tpu_custom_call.1} parent=27 // pred_region
          %vm228 = vcmask 130048
          %229 = vst.msk [vmem:[#allocation2] sm:$0xff] %vm228, 0.0
        $region40: #{tpu_custom_call.1} parent=27 // pred_fallthru
          _
        %v230 = vld [vmem:[%s187] sm:$0xff]
        %v231 = vld [vmem:[%s187 + $0x8] sm:$0xff]
        %s232 = scalar_lea.vmem %s187, 16 [#allocation3]
        %v233 = vld [vmem:[%s232] sm:$0xff]
        %v234 = vld [vmem:[%s232 + $0x8] sm:$0xff]
        %s235 = scalar_lea.vmem %s187, 32 [#allocation3]
        %v236 = vld [vmem:[%s235] sm:$0xff]
        %v237 = vld [vmem:[%s235 + $0x8] sm:$0xff]
        %v238 = vmul.f32 %v230, 0.299
        %v239 = vmul.f32 %v231, 0.299
        %v240 = vmul.f32 %v233, 0.587
        %v241 = vmul.f32 %v234, 0.587
        %v242 = vadd.f32 %v238, %v240
        %v243 = vadd.f32 %v239, %v241
        %v244 = vmul.f32 %v236, 0.114
        %v245 = vmul.f32 %v237, 0.114
        %v246 = vadd.f32 %v242, %v244
        %v247 = vadd.f32 %v243, %v245
        %v248 = vld [vmem:[%s196] sm:$0xff]
        %v249 = vld [vmem:[%s196 + $0x8] sm:$0xff]
        %v250 = vsub.f32 %v246, %v248
        %v251 = vsub.f32 %v247, %v249
        %v252 = vand.u32 2147483647, %v250
        %v253 = vand.u32 2147483647, %v251
        %s254 = smul.u32 %s27, 16
        %v255 = vlaneseq
        %v256 = vshrl.u32 %v255, 7
        %v257 = vadd.s32 %v256, 8
        %v258 = vstv %s254
        %v259 = vadd.s32 %v258, %v256
        %v260 = vadd.s32 %v258, %v257
        %v261 = vlaneseq
        %v262 = vand.u32 %v261, 127
        %vm263 = vcmp.ge.s32.totalorder %v259, 2
        %vm264 = vcmp.ge.s32.totalorder %v260, 2
        %vm265 = vcmp.lt.s32.totalorder %v259, 14
        %vm266 = vcmp.lt.s32.totalorder %v260, 14
        %vm267 = vmand %vm263, %vm265
        %vm268 = vmand %vm264, %vm266
        %vm269 = vcmp.ge.s32.totalorder %v262, 2
        %vm270 = vcmp.lt.s32.totalorder %v262, 14
        %vm271 = vmand %vm269, %vm270
        %v272 = vsel %vm267, 1, 0
        %v273 = vsel %vm268, 1, 0
        %vm274 = vcmp.eq.s32.totalorder %v272, 1
        %vm275 = vcmp.eq.s32.totalorder %v273, 1
        %v276 = vsel %vm271, 1, 0
        %vm277 = vcmp.eq.s32.totalorder %v276, 1
        %vm278 = vmand %vm274, %vm277
        %vm279 = vmand %vm275, %vm277
        %v280 = vsel %vm278, %v252, 0.0
        %v281 = vsel %vm279, %v253, 0.0
        %v282 = vld [vmem:[#allocation2] sm:$0xff]
        %vm283 = vcmask 130048
        %v284 = vsel %vm283, %v280, 0.0
        %v285 = vsel %vm283, %v281, 0.0
        %v286 = vadd.f32 %v284, %v285
        %v287 = vadd.f32 %v282, %v286
        %288 = vst.msk [vmem:[#allocation2] sm:$0xff] %vm283, %v287
        // Predicated region
        $region41: #{tpu_custom_call.1} parent=27 // pred_check
          %p289 = pneg %p224
        $region42: #{tpu_custom_call.1} parent=27 // pred_check_branch
          %291 = sbr.rel (%p289) target = $region44
        $region43: #{tpu_custom_call.1} parent=27 // pred_region
          %v292 = vld [vmem:[#allocation2] sm:$0xff]
          %v293 = vsel %vm283, %v292, 0.0
          %294 = vadd.xlane.f32.xlu0 %v293
          %v295 = vpop.xlane.xlu0 %294
          %v296 = vrot.slane %v295, 4
          %v297 = vadd.f32 %v295, %v296
          %v298 = vrot.slane %v297, 2
          %v299 = vadd.f32 %v297, %v298
          %v300 = vrot.slane %v299, 1
          %v301 = vadd.f32 %v299, %v300
          %s302 = vtos %v301
          %v303 = vstv %s302
          %304 = vst [vmem:[%s221] sm:$0xff] %v303
        $region44: #{tpu_custom_call.1} parent=27 // pred_fallthru
          _
        %s305 = sand.u32 %s98, 1
        %s306 = scalar_lea.sflag [#allocation5], %s305
        %s307 = sand.u32 %s98, 1
        %s308 = smul.addr %s307, 8
        %s309 = scalar_lea.vmem [#allocation8], %s308
        // Predicated region
        $region45: #{tpu_custom_call.1} parent=27 // pred_check
          %p310 = pneg %p108
        $region46: #{tpu_custom_call.1} parent=27 // pred_check_branch
          %312 = sbr.rel (%p310) target = $region48
        $region47: #{tpu_custom_call.1} parent=27 // pred_region
          %s314 = ssub.s32 128, 128
          %315 = vsyncadd %s306, %s314
          %s316 = smul.addr %s26, 128
          %s317 = scalar_lea.hbm %s2, %s316
          %s319 = sshll.u32 %s309, 4
          %s320 = int_to_ptr.vmem [resolvable:$true] %s319
          %322 = dma.vmem_to_hbm [thread:$0]  %s320, 128, %s317, %s306
        $region48: #{tpu_custom_call.1} parent=27 // pred_fallthru
          _
      $region28: #{tpu_custom_call.1} parent=5 // pred_fallthru
        _
      %p323 = scmp.le.s32.totalorder 2, %s17
      // Predicated region
      $region49: #{tpu_custom_call.1} parent=5 // pred_check
        %p324 = pneg %p323
      $region50: #{tpu_custom_call.1} parent=5 // pred_check_branch
        %326 = sbr.rel (%p324) target = $region52
      $region51: #{tpu_custom_call.1} parent=5 // pred_region
        %s327 = ssub.s32 %s17, 2
        // Predicated region
        $region53: #{tpu_custom_call.1} parent=51 // pred_check
          %p328 = pneg %p114
        $region54: #{tpu_custom_call.1} parent=51 // pred_check_branch
          %330 = sbr.rel (%p328) target = $region56
        $region55: #{tpu_custom_call.1} parent=51 // pred_region
          %s331 = sand.u32 %s99, 1
          %s332 = scalar_lea.sflag [#allocation5], %s331
          %s333 = sand.u32 %s99, 1
          %s334 = smul.addr %s333, 8
          %s335 = scalar_lea.vmem [#allocation8], %s334
          %336 = dma.done %s332, 128
        $region56: #{tpu_custom_call.1} parent=51 // pred_fallthru
          _
      $region52: #{tpu_custom_call.1} parent=5 // pred_fallthru
        _
    $region6: #{tpu_custom_call.1} parent=1 // loop_footer
      %s21 = sadd.s32 1, %s17
    $region7: #{tpu_custom_call.1} parent=1 // loop_footer_branch
      %16 = sbr.rel target = $region3
    $region8: #{tpu_custom_call.1} parent=1 // loop_exit
      _
    %337 = vsyncpa [#allocation4], 1
    %s338 = scalar_lea.sflag [#allocation4], 1
    %339 = vsyncpa %s338, 1
    %340 = vsyncpa [#allocation7], 1
    %s341 = scalar_lea.sflag [#allocation7], 1
    %342 = vsyncpa %s341, 1
    %343 = vsyncpa [#allocation5], 1
    %s344 = scalar_lea.sflag [#allocation5], 1
    %345 = vsyncpa %s344, 1

</llo_original>
